<compile_context>
chip_gen: v5e
topology: v5e:2x2
jax: 0.10.0
libtpu: 0.0.40
codegen_flags: <defaults>
</compile_context>

<pallas_src>
import functools

import jax
import jax.numpy as jnp
from jax.experimental import pallas as pl
from jax.experimental.pallas import tpu as pltpu

_LANE = 128
_SUBLANE = 8


def _round_up(a, b):
    return (a + b - 1) // b * b


def _vmem_capacity_bytes():
    """Physical VMEM per TensorCore; conservative 64 MiB if the query fails.

    NOTE: if this ever reports per-chip (2 TCs) on v7x, the 0.6 budget factor
    plus the 100 MiB hard caps keep us from over-committing.
    """
    try:
        return int(pltpu.get_tpu_info().vmem_capacity_bytes)
    except Exception:  # pragma: no cover - defensive (CPU interpret, old jax)
        return 64 << 20


def _snap_to_divisor(tile, dim_al, align):
    """Prefer a tile (multiple of `align`) that divides dim_al so the operands
    need no jnp.pad copy; only accept if it keeps >= half of the chosen tile."""
    if dim_al % tile == 0:
        return tile
    t = (min(tile, dim_al) // align) * align
    while t >= align:
        if dim_al % t == 0:
            break
        t -= align
    if t >= align and dim_al % t == 0 and 2 * t >= tile:
        return t
    return tile


def _pick_tiles(M, N, K, in_dsz, out_dsz, weight_buffers, use_acc_scratch):
    """VMEM-budgeted, MXU-aligned, square-leaning tile sizes for (M,K)x(K,N)."""
    vmem = _vmem_capacity_bytes()
    big_vmem = vmem >= (96 << 20)            # v5e/v6e: 128 MiB; v7x: 64 MiB
    frac = 0.75 if big_vmem else 0.60        # tighter budget on 64 MiB parts
    budget = min(int(vmem * frac), 100 << 20)

    sub = 16 if in_dsz == 2 else _SUBLANE    # bf16 packs 16 rows per sublane pair
    M_al = _round_up(M, sub)
    N_al = _round_up(N, _LANE)
    K_al = _round_up(K, _LANE)

    # Growth caps: generous on 128 MiB chips, v7x-safe otherwise.
    cap_m = 1024 if big_vmem else 512
    cap_n = 2048 if big_vmem else 1024
    cap_k = 1024                             # tk only amortizes overhead

    tm = _round_up(min(256, M_al), sub)
    tn = _round_up(min(512, N_al), _LANE)
    tk = _round_up(min(512, K_al), _LANE)

    wbuf = max(2, int(weight_buffers))

    def footprint(tm_, tn_, tk_):
        fp = (2 * tm_ * tk_ * in_dsz          # x tiles (double-buffered)
              + wbuf * tk_ * tn_ * in_dsz     # weight tiles (wbuf-deep)
              + 2 * tm_ * tn_ * out_dsz       # output tiles
              + 2 * tn_ * 4)                  # bias tiles
        if use_acc_scratch:
            fp += tm_ * tn_ * 4               # f32 accumulator (bf16 out only)
        return fp

    # Shrink defensively if somehow over budget.
    while footprint(tm, tn, tk) > budget and tk > _LANE:
        tk = max(_round_up(tk // 2, _LANE), _LANE)
    while footprint(tm, tn, tk) > budget and tn > _LANE:
        tn = max(_round_up(tn // 2, _LANE), _LANE)
    while footprint(tm, tn, tk) > budget and tm > sub:
        tm = max(_round_up(tm // 2, sub), sub)

    # Grow toward square output tiles (tm ~= tn) first: HBM traffic is set by
    # tm/tn reuse, not tk.  tk grows last, capped at 1024.
    grew = True
    while grew:
        grew = False
        if (tm <= tn and 2 * tm <= min(M_al, cap_m)
                and footprint(2 * tm, tn, tk) <= budget):
            tm *= 2
            grew = True
        elif 2 * tn <= min(N_al, cap_n) and footprint(tm, 2 * tn, tk) <= budget:
            tn *= 2
            grew = True
        elif 2 * tm <= min(M_al, cap_m) and footprint(2 * tm, tn, tk) <= budget:
            tm *= 2
            grew = True
    while 2 * tk <= min(K_al, cap_k) and footprint(tm, tn, 2 * tk) <= budget:
        tk *= 2

    # Snap toward divisors of the aligned dims so jnp.pad (full extra HBM copy
    # of x / weight + wasted MXU flops on zero K) is avoided when possible.
    tm = _snap_to_divisor(tm, M_al, sub)
    tn = _snap_to_divisor(tn, N_al, _LANE)
    tk = _snap_to_divisor(tk, K_al, _LANE)

    # v7x megacore: the 2 TensorCores split the parallel grid.  Small grids
    # with an odd point count idle one core part of the time; nudge to even.
    def _npar(tm_, tn_):
        return ((M_al + tm_ - 1) // tm_) * ((N_al + tn_ - 1) // tn_)

    for _ in range(4):
        npts = _npar(tm, tn)
        if npts >= 8 or npts % 2 == 0:
            break
        if tn >= 2 * _LANE:
            tn //= 2            # halving keeps 128-alignment and divisibility
        elif tm >= 2 * sub:
            tm //= 2
        else:
            break

    return int(tm), int(tn), int(tk)


def _mlp_kernel_acc_out(x_ref, w_ref, b_ref, o_ref):
    """f32 output: accumulate directly into the resident output tile
    (output block index is constant along the k axis, so it stays in VMEM)."""
    @pl.when(pl.program_id(2) == 0)
    def _():
        o_ref[...] = jnp.broadcast_to(
            b_ref[...].astype(o_ref.dtype), o_ref.shape
        )

    o_ref[...] += jnp.dot(
        x_ref[...], w_ref[...], preferred_element_type=jnp.float32
    )


def _mlp_kernel_scratch(x_ref, w_ref, b_ref, o_ref, acc_ref):
    """Narrow (e.g. bf16) output: accumulate in an f32 VMEM scratch, cast once."""
    @pl.when(pl.program_id(2) == 0)
    def _():
        acc_ref[...] = jnp.broadcast_to(
            b_ref[...].astype(jnp.float32), acc_ref.shape
        )

    acc_ref[...] += jnp.dot(
        x_ref[...], w_ref[...], preferred_element_type=jnp.float32
    )

    @pl.when(pl.program_id(2) == pl.num_programs(2) - 1)
    def _():
        o_ref[...] = acc_ref[...].astype(o_ref.dtype)


@functools.partial(
    jax.jit,
    static_argnames=("tm", "tn", "tk", "vmem_limit", "weight_buffers"),
)
def _mlp_pallas(x, weight, bias2d, *, tm, tn, tk, vmem_limit, weight_buffers):
    M, K = x.shape
    _, N = weight.shape
    Mp, Np, Kp = _round_up(M, tm), _round_up(N, tn), _round_up(K, tk)

    # Zero-pad to tile multiples (divisor snapping usually makes these no-ops;
    # padded-K contributions are exactly zero so the result is unchanged).
    if Mp != M or Kp != K:
        x = jnp.pad(x, ((0, Mp - M), (0, Kp - K)))
    if Kp != K or Np != N:
        weight = jnp.pad(weight, ((0, Kp - K), (0, Np - N)))
    if Np != N:
        bias2d = jnp.pad(bias2d, ((0, 0), (0, Np - N)))

    grid = (Mp // tm, Np // tn, Kp // tk)

    out_dtype = x.dtype
    acc_in_out = jnp.dtype(out_dtype) == jnp.dtype(jnp.float32)
    kernel = _mlp_kernel_acc_out if acc_in_out else _mlp_kernel_scratch
    scratch_shapes = [] if acc_in_out else [pltpu.VMEM((tm, tn), jnp.float32)]

    w_spec_kwargs = {}
    if weight_buffers != 2:
        # Deeper pipelining on the (largest) weight-tile stream; accounted for
        # in the tile-footprint budget.
        w_spec_kwargs["pipeline_mode"] = pl.Buffered(weight_buffers)

    out_p = pl.pallas_call(
        kernel,
        out_shape=jax.ShapeDtypeStruct((Mp, Np), out_dtype),
        grid_spec=pltpu.PrefetchScalarGridSpec(
            num_scalar_prefetch=0,
            grid=grid,
            in_specs=[
                pl.BlockSpec((tm, tk), lambda i, j, k: (i, k)),
                pl.BlockSpec((tk, tn), lambda i, j, k: (k, j), **w_spec_kwargs),
                pl.BlockSpec((1, tn), lambda i, j, k: (0, j)),
            ],
            out_specs=pl.BlockSpec((tm, tn), lambda i, j, k: (i, j)),
            scratch_shapes=scratch_shapes,
        ),
        compiler_params=pltpu.CompilerParams(
            dimension_semantics=("parallel", "parallel", "arbitrary"),
            vmem_limit_bytes=vmem_limit,
        ),
    )(x, weight, bias2d)

    if Mp != M or Np != N:
        out_p = out_p[:M, :N]
    return out_p


def mlp_forward(x, weight, bias=None, *, tm=None, tn=None, tk=None,
                weight_buffers=2, allow_xla_fallback=True):
    """Pallas MLP forward: x @ weight (+ bias). Works for arbitrary M, K, N."""
    M, K = x.shape
    K2, N = weight.shape
    assert K == K2, "input_dim mismatch"

    # Tiny-problem dispatch: pallas_call fixed overhead (~0.35 us/grid step +
    # dispatch) dominates grid=(1,1,1) cases and M < 8 wastes MXU rows; let XLA
    # handle those unless the caller explicitly forces the kernel.
    # TODO(synk): callers with [batch, seq, K] activations should flatten to
    # M = batch*seq before calling so M >= 256 keeps the MXU full.
    if allow_xla_fallback and (2 * M * N * K < (1 << 24) or M < _SUBLANE):
        out = jnp.dot(x, weight)
        if bias is not None:
            out = out + bias
        return out

    in_dsz = jnp.dtype(x.dtype).itemsize
    out_dsz = in_dsz
    use_acc_scratch = jnp.dtype(x.dtype) != jnp.dtype(jnp.float32)
    a_tm, a_tn, a_tk = _pick_tiles(
        M, N, K, in_dsz, out_dsz, weight_buffers, use_acc_scratch
    )
    sub = 16 if in_dsz == 2 else _SUBLANE
    tm = a_tm if tm is None else _round_up(tm, sub)
    tn = a_tn if tn is None else _round_up(tn, _LANE)
    tk = a_tk if tk is None else _round_up(tk, _LANE)

    # Scoped VMEM limit: leave headroom below physical capacity
    # (~100 MiB on v5e/v6e, ~56 MiB on v7x).
    vmem = _vmem_capacity_bytes()
    vmem_limit = int(min(100 << 20, max(vmem - (8 << 20), 32 << 20)))

    if bias is None:
        bias2d = jnp.zeros((1, N), dtype=x.dtype)
    else:
        bias2d = bias.reshape(1, N).astype(x.dtype)

    return _mlp_pallas(
        x, weight, bias2d,
        tm=int(tm), tn=int(tn), tk=int(tk),
        vmem_limit=vmem_limit, weight_buffers=int(weight_buffers),
    )


def init_mlp_params(key, input_dim, output_dim, use_bias=True, dtype=jnp.float32):
    """Deterministic init matching nn.init.xavier_normal_ / normal_(std=0.01)."""
    kw, kb = jax.random.split(key)
    std_w = (2.0 / (input_dim + output_dim)) ** 0.5  # xavier_normal_, gain=1
    weight = (jax.random.normal(kw, (input_dim, output_dim)) * std_w).astype(dtype)
    bias = None
    if use_bias:
        bias = (jax.random.normal(kb, (output_dim,)) * 0.01).astype(dtype)
    return weight, bias


if __name__ == "__main__":
    key = jax.random.PRNGKey(0)
    k_x, k_p = jax.random.split(key)

    # Small, module-consistent shapes: batch=8, input_dim=32, output_dim=128.
    batch, input_dim, output_dim = 8, 32, 128
    x = jax.random.normal(k_x, (batch, input_dim), dtype=jnp.float32)
    weight, bias = init_mlp_params(k_p, input_dim, output_dim, use_bias=True)
    ref = x @ weight + bias

    # Force the Pallas path at the small demo shape (the dispatcher would
    # otherwise route this tiny problem to XLA).
    out = mlp_forward(x, weight, bias, allow_xla_fallback=False)
    jax.block_until_ready(out)
    assert out.shape == (batch, output_dim)
    assert jnp.allclose(out, ref, atol=1e-5, rtol=1e-5), "bias path mismatch"

    # Tiny-problem dispatch path (jnp.dot fallback) must match too.
    out_fb = mlp_forward(x, weight, bias)
    jax.block_until_ready(out_fb)
    assert jnp.allclose(out_fb, ref, atol=1e-5, rtol=1e-5), "fallback mismatch"

    # No-bias path (forced Pallas).
    out_nb = mlp_forward(x, weight, None, allow_xla_fallback=False)
    jax.block_until_ready(out_nb)
    assert jnp.allclose(out_nb, x @ weight, atol=1e-5, rtol=1e-5), "no-bias mismatch"

    # Non-tile-divisible shapes exercise the pad-and-slice path.
    b2, d_in2, d_out2 = 5, 37, 131
    x2 = jax.random.normal(k_x, (b2, d_in2), dtype=jnp.float32)
    w2, bias2 = init_mlp_params(k_p, d_in2, d_out2, use_bias=True)
    out2 = mlp_forward(x2, w2, bias2, allow_xla_fallback=False)
    jax.block_until_ready(out2)
    assert jnp.allclose(out2, x2 @ w2 + bias2, atol=1e-5, rtol=1e-5), "padded mismatch"

    # Medium shape exercising the multi-block grid, divisor snapping (no pad)
    # and f32 accumulation directly into the output tile.
    Mm, Km, Nm = 384, 512, 768
    xm = jax.random.normal(k_x, (Mm, Km), dtype=jnp.float32)
    wm, bm = init_mlp_params(k_p, Km, Nm, use_bias=True)
    outm = mlp_forward(xm, wm, bm)
    jax.block_until_ready(outm)
    assert jnp.allclose(outm, xm @ wm + bm, atol=1e-3, rtol=1e-4), "tiled mismatch"

    # bf16 activations/weights with f32 scratch accumulation.
    xb = xm.astype(jnp.bfloat16)
    wb, bb = wm.astype(jnp.bfloat16), bm.astype(jnp.bfloat16)
    out_bf = mlp_forward(xb, wb, bb, allow_xla_fallback=False)
    jax.block_until_ready(out_bf)
    ref_bf = (xb.astype(jnp.float32) @ wb.astype(jnp.float32)
              + bb.astype(jnp.float32))
    assert jnp.allclose(out_bf.astype(jnp.float32), ref_bf, atol=1e-1, rtol=5e-2), \
        "bf16 mismatch"

    print("KERNEL_OK")
</pallas_src>

<mosaic_0001>
module attributes {stable_mosaic.version = 11 : i64} {
  func.func @_mlp_kernel_acc_out(%arg0: i32, %arg1: i32, %arg2: i32, %arg3: memref<8x128xf32, #tpu.memory_space<vmem>>, %arg4: memref<128x128xf32, #tpu.memory_space<vmem>>, %arg5: memref<1x128xf32, #tpu.memory_space<vmem>>, %arg6: memref<8x128xf32, #tpu.memory_space<vmem>>) attributes {dimension_semantics = [#tpu.dimension_semantics<parallel>, #tpu.dimension_semantics<parallel>, #tpu.dimension_semantics<arbitrary>], iteration_bounds = array<i64: 1, 1, 1>, scalar_prefetch = 0 : i64, scratch_operands = 0 : i64, tpu.core_type = #tpu.core_type<tc>, window_params = [{transform_indices = @transform_0, window_bounds = array<i64: 8, 128>}, {transform_indices = @transform_1, window_bounds = array<i64: 128, 128>}, {transform_indices = @transform_2, window_bounds = array<i64: 1, 128>}, {transform_indices = @transform_3, window_bounds = array<i64: 8, 128>}]} {
    %c0_i32 = arith.constant 0 : i32
    %0 = arith.cmpi eq, %arg2, %c0_i32 : i32
    %1 = arith.extui %0 : i1 to i32
    %c0_i32_0 = arith.constant 0 : i32
    %2 = arith.cmpi ne, %1, %c0_i32_0 : i32
    scf.if %2 {
      %c0_8 = arith.constant 0 : index
      %c0_9 = arith.constant 0 : index
      %9 = vector.load %arg5[%c0_8, %c0_9] : memref<1x128xf32, #tpu.memory_space<vmem>>, vector<1x128xf32>
      %10 = vector.shape_cast %9 : vector<1x128xf32> to vector<1x128xf32>
      %11 = vector.broadcast %10 : vector<1x128xf32> to vector<8x128xf32>
      %c0_10 = arith.constant 0 : index
      %c0_11 = arith.constant 0 : index
      %12 = vector.load %arg6[%c0_10, %c0_11] : memref<8x128xf32, #tpu.memory_space<vmem>>, vector<8x128xf32>
      tpu.vector_store %arg6[%c0_10, %c0_11], %11 {strides = array<i32>} : memref<8x128xf32, #tpu.memory_space<vmem>>, vector<8x128xf32>,
    } else {
    }
    %c0 = arith.constant 0 : index
    %c0_1 = arith.constant 0 : index
    %3 = vector.load %arg6[%c0, %c0_1] : memref<8x128xf32, #tpu.memory_space<vmem>>, vector<8x128xf32>
    %c0_2 = arith.constant 0 : index
    %c0_3 = arith.constant 0 : index
    %4 = vector.load %arg3[%c0_2, %c0_3] : memref<8x128xf32, #tpu.memory_space<vmem>>, vector<8x128xf32>
    %c0_4 = arith.constant 0 : index
    %c0_5 = arith.constant 0 : index
    %5 = vector.load %arg4[%c0_4, %c0_5] : memref<128x128xf32, #tpu.memory_space<vmem>>, vector<128x128xf32>
    %cst = arith.constant dense<0.000000e+00> : vector<8x128xf32>
    %6 = tpu.matmul %4, %5, %cst {dimension_numbers = #tpu.dot_dimension_numbers<[1], [0], [0], [1], [0, 0, 1, 1], [], []>} : vector<8x128xf32>, vector<128x128xf32>, vector<8x128xf32> -> vector<8x128xf32>
    %7 = arith.addf %3, %6 : vector<8x128xf32>
    %c0_6 = arith.constant 0 : index
    %c0_7 = arith.constant 0 : index
    %8 = vector.load %arg6[%c0_6, %c0_7] : memref<8x128xf32, #tpu.memory_space<vmem>>, vector<8x128xf32>
    tpu.vector_store %arg6[%c0_6, %c0_7], %7 {strides = array<i32>} : memref<8x128xf32, #tpu.memory_space<vmem>>, vector<8x128xf32>,
    return
  }
  func.func @transform_0(%arg0: i32, %arg1: i32, %arg2: i32) -> (i32, i32) {
    %c0_i32 = arith.constant 0 : i32
    return %arg0, %arg2 : i32, i32
  }
  func.func @transform_1(%arg0: i32, %arg1: i32, %arg2: i32) -> (i32, i32) {
    %c0_i32 = arith.constant 0 : i32
    return %arg2, %arg1 : i32, i32
  }
  func.func @transform_2(%arg0: i32, %arg1: i32, %arg2: i32) -> (i32, i32) {
    %c0_i32 = arith.constant 0 : i32
    %c0_i32_0 = arith.constant 0 : i32
    return %c0_i32, %arg1 : i32, i32
  }
  func.func @transform_3(%arg0: i32, %arg1: i32, %arg2: i32) -> (i32, i32) {
    %c0_i32 = arith.constant 0 : i32
    return %arg0, %arg1 : i32, i32
  }
}

</mosaic_0001>

<llo_original>
// kernel: _mlp_pallas.1
$region0: #{_mlp_pallas.1}
  #allocation0 [shape = 'u32[]', space=smem, size = 0x4, offset = 0x4, fixed_abs, tag = 'smem constant byte address 0x4 - core index']
  #allocation1 [shape = 'u32[72,128]{1,0:T(1,128)}', space=vmem, size = 0x9000, scoped, tag = 'internal scratch']
  %s0 = inlined_call_operand.vmem [shape: f32[8,128], index: 0, kind: input, shape index: {}]
  %s1 = inlined_call_operand.vmem [shape: f32[128,128], index: 1, kind: input, shape index: {}]
  %s2 = inlined_call_operand.vmem [shape: f32[1,128], index: 2, kind: input, shape index: {}]
  %s3 = inlined_call_operand.hbm [shape: f32[8,128], index: 3, kind: output, shape index: {}]
  %s4 = sld [smem:[#allocation0]]
  $region26: #{_mlp_pallas.1} parent=0
    _
  %s6 = ssub.s32 1, %s4
  %s7 = scalar_select 0, %s6, %s4
  $region1: #{_mlp_pallas.1} parent=0
    #allocation2 [shape = 'u8[4096]{0}', space=vmem, size = 0x1000, scoped, tag = 'output window, operand 0, single buffered']
    #allocation3 [shape = 's32[1]{0}', space=sflag, size = 0x4, scoped, tag = 'scoped memory for _mlp_pallas.1']
    %8 = vsyncpa [#allocation3], 0
    // Predicated region
    $region2: #{_mlp_pallas.1} parent=1 // pred_check
      _
    $region3: #{_mlp_pallas.1} parent=1 // pred_check_branch
      %10 = sbr.rel (0) target = $region5
    $region4: #{_mlp_pallas.1} parent=1 // pred_region
      _
    $region5: #{_mlp_pallas.1} parent=1 // pred_fallthru
      _
    // Predicated region
    $region6: #{_mlp_pallas.1} parent=1 // pred_check
      _
    $region7: #{_mlp_pallas.1} parent=1 // pred_check_branch
      %12 = sbr.rel (0) target = $region9
    $region8: #{_mlp_pallas.1} parent=1 // pred_region
      _
    $region9: #{_mlp_pallas.1} parent=1 // pred_fallthru
      _
    // Predicated region
    $region10: #{_mlp_pallas.1} parent=1 // pred_check
      _
    $region11: #{_mlp_pallas.1} parent=1 // pred_check_branch
      %14 = sbr.rel (0) target = $region13
    $region12: #{_mlp_pallas.1} parent=1 // pred_region
      _
    $region13: #{_mlp_pallas.1} parent=1 // pred_fallthru
      _
    %p15 = scmp.eq.s32.totalorder 0, 0
    // Predicated region
    $region14: #{_mlp_pallas.1} parent=1 // pred_check
      %p16 = pneg %p15
    $region15: #{_mlp_pallas.1} parent=1 // pred_check_branch
      %18 = sbr.rel (%p16) target = $region17
    $region16: #{_mlp_pallas.1} parent=1 // pred_region
      %v19 = vld [vmem:[%s2] sm:$0x1]
      %v21 = vperm.slane %v19, 0
      %23 = vst [vmem:[#allocation2] sm:$0xff] %v21
    $region17: #{_mlp_pallas.1} parent=1 // pred_fallthru
      _
    %v24 = vld [vmem:[#allocation2] sm:$0xff]
    %v25 = vld [vmem:[%s0] sm:$0xff]
    %v26 = vld [vmem:[%s1] sm:$0xff]
    %v27 = vld [vmem:[%s1 + $0x8] sm:$0xff]
    %v28 = vld [vmem:[%s1 + $0x10] sm:$0xff]
    %v29 = vld [vmem:[%s1 + $0x18] sm:$0xff]
    %v30 = vld [vmem:[%s1 + $0x20] sm:$0xff]
    %v31 = vld [vmem:[%s1 + $0x28] sm:$0xff]
    %v32 = vld [vmem:[%s1 + $0x30] sm:$0xff]
    %v33 = vld [vmem:[%s1 + $0x38] sm:$0xff]
    %v34 = vld [vmem:[%s1 + $0x40] sm:$0xff]
    %v35 = vld [vmem:[%s1 + $0x48] sm:$0xff]
    %v36 = vld [vmem:[%s1 + $0x50] sm:$0xff]
    %v37 = vld [vmem:[%s1 + $0x58] sm:$0xff]
    %v38 = vld [vmem:[%s1 + $0x60] sm:$0xff]
    %v39 = vld [vmem:[%s1 + $0x68] sm:$0xff]
    %v40 = vld [vmem:[%s1 + $0x70] sm:$0xff]
    %v41 = vld [vmem:[%s1 + $0x78] sm:$0xff]
    %42 = vmatpush.msra.mxu0 %v41
    %43 = vmatpush.msra.mxu0 %v40
    %44 = vmatpush.msra.mxu0 %v39
    %45 = vmatpush.msra.mxu0 %v38
    %46 = vmatpush.msra.mxu0 %v37
    %47 = vmatpush.msra.mxu0 %v36
    %48 = vmatpush.msra.mxu0 %v35
    %49 = vmatpush.msra.mxu0 %v34
    %50 = vmatpush.msra.mxu0 %v33
    %51 = vmatpush.msra.mxu0 %v32
    %52 = vmatpush.msra.mxu0 %v31
    %53 = vmatpush.msra.mxu0 %v30
    %54 = vmatpush.msra.mxu0 %v29
    %55 = vmatpush.msra.mxu0 %v28
    %56 = vmatpush.msra.mxu0 %v27
    %57 = vmatpush.msra.mxu0 %v26
    %58 = vmatmul.f32.gmra.mxu0 %v25
    %v59 = vpop.f32.mrf.mxu0
    %v60 = vadd.f32 0.0, %v59
    %61 = vdwg.mxu0
    %v62 = vadd.f32 %v24, %v60
    %63 = vst [vmem:[#allocation2] sm:$0xff] %v62
    // Predicated region
    $region18: #{_mlp_pallas.1} parent=1 // pred_check
      _
    $region19: #{_mlp_pallas.1} parent=1 // pred_check_branch
      %65 = sbr.rel (0) target = $region21
    $region20: #{_mlp_pallas.1} parent=1 // pred_region
      %67 = vsyncadd [#allocation3], 0
      %s69 = sshll.u32 [#allocation2], 4
      %s70 = int_to_ptr.vmem [resolvable:$true] %s69
      %s71 = sshll.u32 %s3, 4
      %s72 = int_to_ptr.hbm [resolvable:$true] %s71
      %74 = dma.vmem_to_hbm [thread:$0]  %s70, 128, %s72, [#allocation3]
    $region21: #{_mlp_pallas.1} parent=1 // pred_fallthru
      _
    // Predicated region
    $region22: #{_mlp_pallas.1} parent=1 // pred_check
      _
    $region23: #{_mlp_pallas.1} parent=1 // pred_check_branch
      %76 = sbr.rel (0) target = $region25
    $region24: #{_mlp_pallas.1} parent=1 // pred_region
      %78 = dma.done [#allocation3], 128
    $region25: #{_mlp_pallas.1} parent=1 // pred_fallthru
      _
    %79 = vsyncpa [#allocation3], 1

</llo_original>
